<compile_context>
chip_gen: v7x
topology: tpu7x:2x2x1
jax: 0.10.0
libtpu: 0.0.40
codegen_flags: <defaults>
</compile_context>

<pallas_src>
import functools

import jax
import jax.numpy as jnp
from jax.experimental import pallas as pl
from jax.experimental.pallas import tpu as pltpu


def _round_up(x: int, m: int) -> int:
    return ((x + m - 1) // m) * m


def make_perturbation_kernel(max_action: float, phi: float):
    """Build the Pallas kernel body with static max_action / phi baked in."""

    def kernel(s_ref, a_ref, w1s_ref, w1a_ref, b1_ref, w2_ref, b2_ref, o_ref):
        # s_ref:   [TB, S]      f32   (one row per state)
        # a_ref:   [TB, C*A]    f32   (all candidate actions folded on lanes)
        # w1s_ref: [S,   C*H]   bf16  (lane-tiled state weights)
        # w1a_ref: [C*A, C*H]   bf16  (block-diagonal action weights)
        # b1_ref:  [1,   C*H]   f32
        # w2_ref:  [C*H, C*A]   bf16  (block-diagonal output weights)
        # b2_ref:  [1,   C*A]   f32
        # o_ref:   [TB, C*A]          lane-dense output store
        a_f32 = a_ref[...]                       # f32 copy for residual add / clamp
        s_bf = s_ref[...].astype(jnp.bfloat16)   # bf16 only for the MXU inputs
        a_bf = a_f32.astype(jnp.bfloat16)

        # Hidden layer for all candidates at once: [TB, C*H], f32 accumulate.
        h = jnp.dot(s_bf, w1s_ref[...], preferred_element_type=jnp.float32)
        h = h + jnp.dot(a_bf, w1a_ref[...], preferred_element_type=jnp.float32)
        h = jnp.maximum(h + b1_ref[...], 0.0)

        # Output layer -> logits [TB, C*A] (block-diagonal keeps candidates separate).
        logits = jnp.dot(h.astype(jnp.bfloat16), w2_ref[...],
                         preferred_element_type=jnp.float32)
        logits = logits + b2_ref[...]

        # noise = phi * max_action * tanh(logits); clamp(noise + action)   (all f32)
        noise = (phi * max_action) * jnp.tanh(logits)
        out = jnp.clip(noise + a_f32, -max_action, max_action)
        o_ref[...] = out.astype(o_ref.dtype)

    return kernel


def _pick_row_tile(n_rows: int, block_rows: int) -> int:
    """Row tile: single full-extent block when tiny, >=2 blocks when possible
    (feeds both v7x TensorCores), capped at block_rows for large N."""
    if n_rows < 16:
        return n_rows                                  # full-extent block, always legal
    if n_rows <= 2 * block_rows:
        return _round_up(pl.cdiv(n_rows, 2), 8)        # exactly 2 blocks (last may be ragged)
    return block_rows


def prepare_params(params, num_cand: int):
    """Fold per-candidate structure into the weights once (outside hot path)."""
    w1_s, w1_a, b1, w2, b2 = params
    C = num_cand
    eye = jnp.eye(C, dtype=jnp.float32)
    w1s_big = jnp.tile(w1_s, (1, C))                                    # [S,   C*H]
    w1a_big = jnp.kron(eye, w1_a.astype(jnp.float32)).astype(w1_a.dtype)  # [C*A, C*H]
    b1_big = jnp.tile(b1, (1, C))                                       # [1,   C*H]
    w2_big = jnp.kron(eye, w2.astype(jnp.float32)).astype(w2.dtype)     # [C*H, C*A]
    b2_big = jnp.tile(b2, (1, C))                                       # [1,   C*A]
    return w1s_big, w1a_big, b1_big, w2_big, b2_big


@functools.partial(jax.jit, static_argnames=("max_action", "phi", "block_rows"))
def perturbation_forward(state, actions, prepared_params, *, max_action: float,
                         phi: float, block_rows: int = 512):
    """state: [N, S] f32, actions: [N, C, A] f32 -> perturbed actions [N, C, A]."""
    w1s_big, w1a_big, b1_big, w2_big, b2_big = prepared_params
    N, S = state.shape
    _, C, A = actions.shape
    CA = C * A
    CH = b1_big.shape[-1]
    assert w1a_big.shape == (CA, CH) and w2_big.shape == (CH, CA), \
        "prepared_params were built for a different num_candidates / action_dim"

    # Fold candidates onto the lane axis (free, contiguous reshape).
    act2d = actions.reshape(N, CA)

    tb = _pick_row_tile(N, block_rows)
    grid = (pl.cdiv(N, tb),)

    kernel = make_perturbation_kernel(max_action, phi)

    bytes_accessed = (state.size * state.dtype.itemsize
                      + act2d.size * act2d.dtype.itemsize
                      + w1s_big.size * w1s_big.dtype.itemsize
                      + w1a_big.size * w1a_big.dtype.itemsize
                      + b1_big.size * b1_big.dtype.itemsize
                      + w2_big.size * w2_big.dtype.itemsize
                      + b2_big.size * b2_big.dtype.itemsize
                      + N * CA * actions.dtype.itemsize)
    cost = pl.CostEstimate(
        flops=2 * N * CH * (S + CA) + 2 * N * CH * CA,
        transcendentals=N * CA,
        bytes_accessed=bytes_accessed,
    )

    out = pl.pallas_call(
        kernel,
        out_shape=jax.ShapeDtypeStruct((N, CA), actions.dtype),
        grid=grid,
        in_specs=[
            pl.BlockSpec((tb, S), lambda i: (i, 0)),    # state  (tiled over rows)
            pl.BlockSpec((tb, CA), lambda i: (i, 0)),   # actions (lane-dense)
            pl.BlockSpec((S, CH), lambda i: (0, 0)),    # w1s_big (VMEM-resident)
            pl.BlockSpec((CA, CH), lambda i: (0, 0)),   # w1a_big
            pl.BlockSpec((1, CH), lambda i: (0, 0)),    # b1_big
            pl.BlockSpec((CH, CA), lambda i: (0, 0)),   # w2_big
            pl.BlockSpec((1, CA), lambda i: (0, 0)),    # b2_big
        ],
        out_specs=pl.BlockSpec((tb, CA), lambda i: (i, 0)),
        compiler_params=pltpu.CompilerParams(
            dimension_semantics=("parallel",)),
        cost_estimate=cost,
    )(state, act2d, w1s_big, w1a_big, b1_big, w2_big, b2_big)

    return out.reshape(N, C, A)


def init_params(key, state_dim, action_dim, hidden, out_dim,
                w_dtype=jnp.bfloat16):
    """Deterministic synthetic parameter init. Weights bf16, biases f32."""
    k1, k2, k3, k4, k5 = jax.random.split(key, 5)
    in_dim = state_dim + action_dim
    s1 = 1.0 / float(in_dim) ** 0.5
    s2 = 1.0 / float(hidden) ** 0.5
    w1_s = (jax.random.normal(k1, (state_dim, hidden), jnp.float32) * s1).astype(w_dtype)
    w1_a = (jax.random.normal(k2, (action_dim, hidden), jnp.float32) * s1).astype(w_dtype)
    b1 = jax.random.normal(k3, (1, hidden), jnp.float32) * 0.01
    w2 = (jax.random.normal(k4, (hidden, out_dim), jnp.float32) * s2).astype(w_dtype)
    b2 = jax.random.normal(k5, (1, out_dim), jnp.float32) * 0.01
    return w1_s, w1_a, b1, w2, b2


if __name__ == "__main__":
    # Typical BCQ usage: NUM_CAND perturbed candidate actions per state.
    # NUM_CAND * ACTION_DIM = 128 -> output rows are exactly one lane group.
    BATCH, NUM_CAND = 4, 16
    STATE_DIM, ACTION_DIM, HIDDEN = 24, 8, 32
    MAX_ACTION, PHI = 1.0, 0.05

    key = jax.random.PRNGKey(0)
    ks, ka, kp = jax.random.split(key, 3)
    state = jax.random.normal(ks, (BATCH, STATE_DIM), jnp.float32)          # [N, S]
    actions = jnp.tanh(
        jax.random.normal(ka, (BATCH, NUM_CAND, ACTION_DIM), jnp.float32)) * MAX_ACTION

    base_params = init_params(kp, STATE_DIM, ACTION_DIM, HIDDEN, ACTION_DIM)
    prepared = prepare_params(base_params, NUM_CAND)   # built once, outside hot path

    out = perturbation_forward(state, actions, prepared,
                               max_action=MAX_ACTION, phi=PHI)
    out = jax.block_until_ready(out)

    # Pure-JAX f32 reference of the original module semantics (weights upcast).
    w1_s, w1_a, b1, w2, b2 = base_params
    state_rep = jnp.repeat(state, NUM_CAND, axis=0)                         # [N*C, S]
    act_flat = actions.reshape(-1, ACTION_DIM)                              # [N*C, A]
    x = jnp.concatenate([state_rep, act_flat], axis=-1)
    w1 = jnp.concatenate([w1_s, w1_a], axis=0).astype(jnp.float32)
    h = jnp.maximum(x @ w1 + b1, 0.0)
    logits = h @ w2.astype(jnp.float32) + b2
    ref = jnp.clip(PHI * MAX_ACTION * jnp.tanh(logits) + act_flat,
                   -MAX_ACTION, MAX_ACTION).reshape(BATCH, NUM_CAND, ACTION_DIM)

    # Kernel uses bf16 matmul inputs (f32 accumulate); noise scale is phi*max_action,
    # so absolute error on the clamped output stays well under 5e-3.
    assert out.shape == (BATCH, NUM_CAND, ACTION_DIM)
    assert jnp.allclose(out, ref, atol=5e-3), "mismatch vs reference"

    print("KERNEL_OK")
</pallas_src>

<mosaic_0001>
module attributes {stable_mosaic.version = 11 : i64} {
  func.func @kernel(%arg0: i32, %arg1: memref<4x24xf32, #tpu.memory_space<vmem>>, %arg2: memref<4x128xf32, #tpu.memory_space<vmem>>, %arg3: memref<24x512xbf16, #tpu.memory_space<vmem>>, %arg4: memref<128x512xbf16, #tpu.memory_space<vmem>>, %arg5: memref<1x512xf32, #tpu.memory_space<vmem>>, %arg6: memref<512x128xbf16, #tpu.memory_space<vmem>>, %arg7: memref<1x128xf32, #tpu.memory_space<vmem>>, %arg8: memref<4x128xf32, #tpu.memory_space<vmem>>) attributes {dimension_semantics = [#tpu.dimension_semantics<parallel>], iteration_bounds = array<i64: 1>, scalar_prefetch = 0 : i64, scratch_operands = 0 : i64, tpu.core_type = #tpu.core_type<tc>, window_params = [{transform_indices = @transform_0, window_bounds = array<i64: 4, 24>}, {transform_indices = @transform_1, window_bounds = array<i64: 4, 128>}, {pipeline_mode = #tpu.pipeline_mode<synchronous>, transform_indices = @transform_2, window_bounds = array<i64: 24, 512>}, {pipeline_mode = #tpu.pipeline_mode<synchronous>, transform_indices = @transform_3, window_bounds = array<i64: 128, 512>}, {pipeline_mode = #tpu.pipeline_mode<synchronous>, transform_indices = @transform_4, window_bounds = array<i64: 1, 512>}, {pipeline_mode = #tpu.pipeline_mode<synchronous>, transform_indices = @transform_5, window_bounds = array<i64: 512, 128>}, {pipeline_mode = #tpu.pipeline_mode<synchronous>, transform_indices = @transform_6, window_bounds = array<i64: 1, 128>}, {transform_indices = @transform_7, window_bounds = array<i64: 4, 128>}]} {
    %c0 = arith.constant 0 : index
    %c0_0 = arith.constant 0 : index
    %0 = vector.load %arg2[%c0, %c0_0] : memref<4x128xf32, #tpu.memory_space<vmem>>, vector<4x128xf32>
    %c0_1 = arith.constant 0 : index
    %c0_2 = arith.constant 0 : index
    %1 = vector.load %arg1[%c0_1, %c0_2] : memref<4x24xf32, #tpu.memory_space<vmem>>, vector<4x24xf32>
    %2 = arith.truncf %1 : vector<4x24xf32> to vector<4x24xbf16>
    %3 = arith.truncf %0 : vector<4x128xf32> to vector<4x128xbf16>
    %c0_3 = arith.constant 0 : index
    %c0_4 = arith.constant 0 : index
    %4 = vector.load %arg3[%c0_3, %c0_4] : memref<24x512xbf16, #tpu.memory_space<vmem>>, vector<24x512xbf16>
    %cst = arith.constant dense<0.000000e+00> : vector<4x512xf32>
    %5 = tpu.matmul %2, %4, %cst {dimension_numbers = #tpu.dot_dimension_numbers<[1], [0], [0], [1], [0, 0, 1, 1], [], []>} : vector<4x24xbf16>, vector<24x512xbf16>, vector<4x512xf32> -> vector<4x512xf32>
    %c0_5 = arith.constant 0 : index
    %c0_6 = arith.constant 0 : index
    %6 = vector.load %arg4[%c0_5, %c0_6] : memref<128x512xbf16, #tpu.memory_space<vmem>>, vector<128x512xbf16>
    %cst_7 = arith.constant dense<0.000000e+00> : vector<4x512xf32>
    %7 = tpu.matmul %3, %6, %cst_7 {dimension_numbers = #tpu.dot_dimension_numbers<[1], [0], [0], [1], [0, 0, 1, 1], [], []>} : vector<4x128xbf16>, vector<128x512xbf16>, vector<4x512xf32> -> vector<4x512xf32>
    %8 = arith.addf %5, %7 : vector<4x512xf32>
    %c0_8 = arith.constant 0 : index
    %c0_9 = arith.constant 0 : index
    %9 = vector.load %arg5[%c0_8, %c0_9] : memref<1x512xf32, #tpu.memory_space<vmem>>, vector<1x512xf32>
    %10 = vector.broadcast %9 : vector<1x512xf32> to vector<4x512xf32>
    %11 = arith.addf %8, %10 : vector<4x512xf32>
    %cst_10 = arith.constant 0.000000e+00 : f32
    %12 = vector.broadcast %cst_10 : f32 to vector<4x512xf32>
    %13 = arith.maximumf %11, %12 : vector<4x512xf32>
    %14 = arith.truncf %13 : vector<4x512xf32> to vector<4x512xbf16>
    %c0_11 = arith.constant 0 : index
    %c0_12 = arith.constant 0 : index
    %15 = vector.load %arg6[%c0_11, %c0_12] : memref<512x128xbf16, #tpu.memory_space<vmem>>, vector<512x128xbf16>
    %cst_13 = arith.constant dense<0.000000e+00> : vector<4x128xf32>
    %16 = tpu.matmul %14, %15, %cst_13 {dimension_numbers = #tpu.dot_dimension_numbers<[1], [0], [0], [1], [0, 0, 1, 1], [], []>} : vector<4x512xbf16>, vector<512x128xbf16>, vector<4x128xf32> -> vector<4x128xf32>
    %c0_14 = arith.constant 0 : index
    %c0_15 = arith.constant 0 : index
    %17 = vector.load %arg7[%c0_14, %c0_15] : memref<1x128xf32, #tpu.memory_space<vmem>>, vector<1x128xf32>
    %18 = vector.broadcast %17 : vector<1x128xf32> to vector<4x128xf32>
    %19 = arith.addf %16, %18 : vector<4x128xf32>
    %20 = math.tanh %19 : vector<4x128xf32>
    %cst_16 = arith.constant 5.000000e-02 : f32
    %21 = vector.broadcast %cst_16 : f32 to vector<4x128xf32>
    %22 = arith.mulf %21, %20 : vector<4x128xf32>
    %23 = arith.addf %22, %0 : vector<4x128xf32>
    %cst_17 = arith.constant -1.000000e+00 : f32
    %cst_18 = arith.constant 1.000000e+00 : f32
    %24 = vector.broadcast %cst_17 : f32 to vector<4x128xf32>
    %25 = arith.maximumf %24, %23 : vector<4x128xf32>
    %26 = vector.broadcast %cst_18 : f32 to vector<4x128xf32>
    %27 = arith.minimumf %26, %25 : vector<4x128xf32>
    %c0_19 = arith.constant 0 : index
    %c0_20 = arith.constant 0 : index
    %28 = vector.load %arg8[%c0_19, %c0_20] : memref<4x128xf32, #tpu.memory_space<vmem>>, vector<4x128xf32>
    tpu.vector_store %arg8[%c0_19, %c0_20], %27 {strides = array<i32>} : memref<4x128xf32, #tpu.memory_space<vmem>>, vector<4x128xf32>,
    return
  }
  func.func @transform_0(%arg0: i32) -> (i32, i32) {
    %c0_i32 = arith.constant 0 : i32
    %c0_i32_0 = arith.constant 0 : i32
    return %arg0, %c0_i32 : i32, i32
  }
  func.func @transform_1(%arg0: i32) -> (i32, i32) {
    %c0_i32 = arith.constant 0 : i32
    %c0_i32_0 = arith.constant 0 : i32
    return %arg0, %c0_i32 : i32, i32
  }
  func.func @transform_2(%arg0: i32) -> (i32, i32) {
    %c0_i32 = arith.constant 0 : i32
    %c0_i32_0 = arith.constant 0 : i32
    %c0_i32_1 = arith.constant 0 : i32
    return %c0_i32, %c0_i32_0 : i32, i32
  }
  func.func @transform_3(%arg0: i32) -> (i32, i32) {
    %c0_i32 = arith.constant 0 : i32
    %c0_i32_0 = arith.constant 0 : i32
    %c0_i32_1 = arith.constant 0 : i32
    return %c0_i32, %c0_i32_0 : i32, i32
  }
  func.func @transform_4(%arg0: i32) -> (i32, i32) {
    %c0_i32 = arith.constant 0 : i32
    %c0_i32_0 = arith.constant 0 : i32
    %c0_i32_1 = arith.constant 0 : i32
    return %c0_i32, %c0_i32_0 : i32, i32
  }
  func.func @transform_5(%arg0: i32) -> (i32, i32) {
    %c0_i32 = arith.constant 0 : i32
    %c0_i32_0 = arith.constant 0 : i32
    %c0_i32_1 = arith.constant 0 : i32
    return %c0_i32, %c0_i32_0 : i32, i32
  }
  func.func @transform_6(%arg0: i32) -> (i32, i32) {
    %c0_i32 = arith.constant 0 : i32
    %c0_i32_0 = arith.constant 0 : i32
    %c0_i32_1 = arith.constant 0 : i32
    return %c0_i32, %c0_i32_0 : i32, i32
  }
  func.func @transform_7(%arg0: i32) -> (i32, i32) {
    %c0_i32 = arith.constant 0 : i32
    %c0_i32_0 = arith.constant 0 : i32
    return %arg0, %c0_i32 : i32, i32
  }
}

</mosaic_0001>

<llo_original>
// kernel: perturbation_forward.1
$region0: #{perturbation_forward.1}
  #allocation0 [shape = 'u32[]', space=smem, size = 0x4, offset = 0x4, fixed_abs, tag = 'smem constant byte address 0x4 - core index']
  #allocation1 [shape = 'u32[144,128]{1,0:T(1,128)}', space=vmem, size = 0x12000, scoped, tag = 'internal scratch']
  %s0 = inlined_call_operand.vmem [shape: f32[4,24], index: 0, kind: input, shape index: {}]
  %s1 = inlined_call_operand.vmem [shape: f32[4,128], index: 1, kind: input, shape index: {}]
  %s2 = inlined_call_operand.vmem [shape: bf16[24,512], index: 2, kind: input, shape index: {}]
  %s3 = inlined_call_operand.hbm [shape: bf16[128,512], index: 3, kind: input, shape index: {}]
  %s4 = inlined_call_operand.vmem [shape: f32[1,512], index: 4, kind: input, shape index: {}]
  %s5 = inlined_call_operand.hbm [shape: bf16[512,128], index: 5, kind: input, shape index: {}]
  %s6 = inlined_call_operand.vmem [shape: f32[1,128], index: 6, kind: input, shape index: {}]
  %s7 = inlined_call_operand.vmem [shape: f32[4,128], index: 7, kind: output, shape index: {}]
  %s8 = sld [smem:[#allocation0]]
  $region46: #{perturbation_forward.1} parent=0
    _
  %s10 = ssub.s32 1, %s8
  %s11 = scalar_select 0, %s10, %s8
  $region1: #{perturbation_forward.1} parent=0
    #allocation2 [shape = 'u8[131072]{0}', space=vmem, size = 0x20000, scoped, tag = 'input window, operand 3, single buffered']
    #allocation3 [shape = 's32[1]{0}', space=sflag, size = 0x4, scoped, tag = 'scoped memory for perturbation_forward.1']
    #allocation4 [shape = 'u8[131072]{0}', space=vmem, size = 0x20000, scoped, tag = 'input window, operand 5, single buffered']
    #allocation5 [shape = 's32[1]{0}', space=sflag, size = 0x4, scoped, tag = 'scoped memory for perturbation_forward.1']
    %12 = vsyncpa [#allocation3], 0
    %13 = vsyncpa [#allocation5], 0
    // Predicated region
    $region2: #{perturbation_forward.1} parent=1 // pred_check
      _
    $region3: #{perturbation_forward.1} parent=1 // pred_check_branch
      %15 = sbr.rel (0) target = $region5
    $region4: #{perturbation_forward.1} parent=1 // pred_region
      _
    $region5: #{perturbation_forward.1} parent=1 // pred_fallthru
      _
    // Predicated region
    $region6: #{perturbation_forward.1} parent=1 // pred_check
      _
    $region7: #{perturbation_forward.1} parent=1 // pred_check_branch
      %17 = sbr.rel (0) target = $region9
    $region8: #{perturbation_forward.1} parent=1 // pred_region
      _
    $region9: #{perturbation_forward.1} parent=1 // pred_fallthru
      _
    // Predicated region
    $region10: #{perturbation_forward.1} parent=1 // pred_check
      _
    $region11: #{perturbation_forward.1} parent=1 // pred_check_branch
      %19 = sbr.rel (0) target = $region13
    $region12: #{perturbation_forward.1} parent=1 // pred_region
      _
    $region13: #{perturbation_forward.1} parent=1 // pred_fallthru
      _
    // Predicated region
    $region14: #{perturbation_forward.1} parent=1 // pred_check
      _
    $region15: #{perturbation_forward.1} parent=1 // pred_check_branch
      %21 = sbr.rel (0) target = $region17
    $region16: #{perturbation_forward.1} parent=1 // pred_region
      %s23 = ssub.s32 4096, 4096
      %24 = vsyncadd [#allocation3], %s23
      %s25 = sshll.u32 [#allocation2], 4
      %s26 = int_to_ptr.vmem [resolvable:$true] %s25
      %31 = dma.hbm_to_vmem [thread:$0]  %s3, 4096, %s26, [#allocation3], 256, 256, 16
    $region17: #{perturbation_forward.1} parent=1 // pred_fallthru
      _
    // Predicated region
    $region18: #{perturbation_forward.1} parent=1 // pred_check
      _
    $region19: #{perturbation_forward.1} parent=1 // pred_check_branch
      %33 = sbr.rel (0) target = $region21
    $region20: #{perturbation_forward.1} parent=1 // pred_region
      _
    $region21: #{perturbation_forward.1} parent=1 // pred_fallthru
      _
    // Predicated region
    $region22: #{perturbation_forward.1} parent=1 // pred_check
      _
    $region23: #{perturbation_forward.1} parent=1 // pred_check_branch
      %35 = sbr.rel (0) target = $region25
    $region24: #{perturbation_forward.1} parent=1 // pred_region
      %s37 = ssub.s32 4096, 4096
      %38 = vsyncadd [#allocation5], %s37
      %s39 = sshll.u32 [#allocation4], 4
      %s40 = int_to_ptr.vmem [resolvable:$true] %s39
      %45 = dma.hbm_to_vmem [thread:$0]  %s5, 4096, %s40, [#allocation5], 64, 64, 4
    $region25: #{perturbation_forward.1} parent=1 // pred_fallthru
      _
    // Predicated region
    $region26: #{perturbation_forward.1} parent=1 // pred_check
      _
    $region27: #{perturbation_forward.1} parent=1 // pred_check_branch
      %47 = sbr.rel (0) target = $region29
    $region28: #{perturbation_forward.1} parent=1 // pred_region
      _
    $region29: #{perturbation_forward.1} parent=1 // pred_fallthru
      _
    // Predicated region
    $region30: #{perturbation_forward.1} parent=1 // pred_check
      _
    $region31: #{perturbation_forward.1} parent=1 // pred_check_branch
      %49 = sbr.rel (0) target = $region33
    $region32: #{perturbation_forward.1} parent=1 // pred_region
      %50 = dma.done [#allocation3], 4096
    $region33: #{perturbation_forward.1} parent=1 // pred_fallthru
      _
    // Predicated region
    $region34: #{perturbation_forward.1} parent=1 // pred_check
      _
    $region35: #{perturbation_forward.1} parent=1 // pred_check_branch
      %52 = sbr.rel (0) target = $region37
    $region36: #{perturbation_forward.1} parent=1 // pred_region
      %53 = dma.done [#allocation5], 4096
    $region37: #{perturbation_forward.1} parent=1 // pred_fallthru
      _
    %v55 = vld [vmem:[%s1] sm:$0xf]
    %v56 = vld [vmem:[%s0] sm:$0xf]
    %v57 = vpack.c.bf16 %v56, %v56
    %v58 = vpack.c.bf16 %v55, %v55
    %v59 = vld [vmem:[%s2] sm:$0xff]
    %v60 = vld [vmem:[%s2 + $0x8] sm:$0xff]
    %v61 = vld [vmem:[%s2 + $0x10] sm:$0xff]
    %v62 = vld [vmem:[%s2 + $0x18] sm:$0xff]
    %v63 = vld [vmem:[%s2 + $0x20] sm:$0xff]
    %v64 = vld [vmem:[%s2 + $0x28] sm:$0xff]
    %v65 = vld [vmem:[#allocation2] sm:$0xff]
    %v66 = vld [vmem:[#allocation2 + $0x8] sm:$0xff]
    %v67 = vld [vmem:[#allocation2 + $0x10] sm:$0xff]
    %v68 = vld [vmem:[#allocation2 + $0x18] sm:$0xff]
    %v69 = vld [vmem:[#allocation2 + $0x20] sm:$0xff]
    %v70 = vld [vmem:[#allocation2 + $0x28] sm:$0xff]
    %v71 = vld [vmem:[#allocation2 + $0x30] sm:$0xff]
    %v72 = vld [vmem:[#allocation2 + $0x38] sm:$0xff]
    %v73 = vld [vmem:[#allocation2 + $0x40] sm:$0xff]
    %v74 = vld [vmem:[#allocation2 + $0x48] sm:$0xff]
    %v75 = vld [vmem:[#allocation2 + $0x50] sm:$0xff]
    %v76 = vld [vmem:[#allocation2 + $0x58] sm:$0xff]
    %v77 = vld [vmem:[#allocation2 + $0x60] sm:$0xff]
    %v78 = vld [vmem:[#allocation2 + $0x68] sm:$0xff]
    %v79 = vld [vmem:[#allocation2 + $0x70] sm:$0xff]
    %v80 = vld [vmem:[#allocation2 + $0x78] sm:$0xff]
    %v81 = vld [vmem:[#allocation2 + $0x80] sm:$0xff]
    %v82 = vld [vmem:[#allocation2 + $0x88] sm:$0xff]
    %v83 = vld [vmem:[#allocation2 + $0x90] sm:$0xff]
    %v84 = vld [vmem:[#allocation2 + $0x98] sm:$0xff]
    %v85 = vld [vmem:[#allocation2 + $0xa0] sm:$0xff]
    %v86 = vld [vmem:[#allocation2 + $0xa8] sm:$0xff]
    %v87 = vld [vmem:[#allocation2 + $0xb0] sm:$0xff]
    %v88 = vld [vmem:[#allocation2 + $0xb8] sm:$0xff]
    %v89 = vld [vmem:[#allocation2 + $0xc0] sm:$0xff]
    %v90 = vld [vmem:[#allocation2 + $0xc8] sm:$0xff]
    %v91 = vld [vmem:[#allocation2 + $0xd0] sm:$0xff]
    %v92 = vld [vmem:[#allocation2 + $0xd8] sm:$0xff]
    %v93 = vld [vmem:[#allocation2 + $0xe0] sm:$0xff]
    %v94 = vld [vmem:[#allocation2 + $0xe8] sm:$0xff]
    %v95 = vld [vmem:[#allocation2 + $0xf0] sm:$0xff]
    %v96 = vld [vmem:[#allocation2 + $0xf8] sm:$0xff]
    %v129 = vunpack.c.l.b16 %v65
    %v130 = vunpack.c.h.b16 %v65
    %v131 = vunpack.c.l.b16 %v66
    %v132 = vunpack.c.h.b16 %v66
    %v133 = vunpack.c.l.b16 %v67
    %v134 = vunpack.c.h.b16 %v67
    %v135 = vunpack.c.l.b16 %v68
    %v136 = vunpack.c.h.b16 %v68
    %v137 = vunpack.c.l.b16 %v69
    %v138 = vunpack.c.h.b16 %v69
    %v139 = vunpack.c.l.b16 %v70
    %v140 = vunpack.c.h.b16 %v70
    %v141 = vunpack.c.l.b16 %v71
    %v142 = vunpack.c.h.b16 %v71
    %v143 = vunpack.c.l.b16 %v72
    %v144 = vunpack.c.h.b16 %v72
    %v145 = vunpack.c.l.b16 %v73
    %v146 = vunpack.c.h.b16 %v73
    %v147 = vunpack.c.l.b16 %v74
    %v148 = vunpack.c.h.b16 %v74
    %v149 = vunpack.c.l.b16 %v75
    %v150 = vunpack.c.h.b16 %v75
    %v151 = vunpack.c.l.b16 %v76
    %v152 = vunpack.c.h.b16 %v76
    %v153 = vunpack.c.l.b16 %v77
    %v154 = vunpack.c.h.b16 %v77
    %v155 = vunpack.c.l.b16 %v78
    %v156 = vunpack.c.h.b16 %v78
    %v157 = vunpack.c.l.b16 %v79
    %v158 = vunpack.c.h.b16 %v79
    %v159 = vunpack.c.l.b16 %v80
    %v160 = vunpack.c.h.b16 %v80
    %v161 = vunpack.c.l.b16 %v81
    %v162 = vunpack.c.h.b16 %v81
    %v163 = vunpack.c.l.b16 %v82
    %v164 = vunpack.c.h.b16 %v82
    %v165 = vunpack.c.l.b16 %v83
    %v166 = vunpack.c.h.b16 %v83
    %v167 = vunpack.c.l.b16 %v84
    %v168 = vunpack.c.h.b16 %v84
    %v169 = vunpack.c.l.b16 %v85
    %v170 = vunpack.c.h.b16 %v85
    %v171 = vunpack.c.l.b16 %v86
    %v172 = vunpack.c.h.b16 %v86
    %v173 = vunpack.c.l.b16 %v87
    %v174 = vunpack.c.h.b16 %v87
    %v175 = vunpack.c.l.b16 %v88
    %v176 = vunpack.c.h.b16 %v88
    %v177 = vunpack.c.l.b16 %v89
    %v178 = vunpack.c.h.b16 %v89
    %v179 = vunpack.c.l.b16 %v90
    %v180 = vunpack.c.h.b16 %v90
    %v181 = vunpack.c.l.b16 %v91
    %v182 = vunpack.c.h.b16 %v91
    %v183 = vunpack.c.l.b16 %v92
    %v184 = vunpack.c.h.b16 %v92
    %v185 = vunpack.c.l.b16 %v93
    %v186 = vunpack.c.h.b16 %v93
    %v187 = vunpack.c.l.b16 %v94
    %v188 = vunpack.c.h.b16 %v94
    %v189 = vunpack.c.l.b16 %v95
    %v190 = vunpack.c.h.b16 %v95
    %v191 = vunpack.c.l.b16 %v96
    %v192 = vunpack.c.h.b16 %v96
    %v193 = vpack.c.b16 %v133, %v129
    %v194 = vpack.c.b16 %v134, %v130
    %v195 = vpack.c.b16 %v135, %v131
    %v196 = vpack.c.b16 %v136, %v132
    %v197 = vpack.c.b16 %v141, %v137
    %v198 = vpack.c.b16 %v142, %v138
    %v199 = vpack.c.b16 %v143, %v139
    %v200 = vpack.c.b16 %v144, %v140
    %v201 = vpack.c.b16 %v149, %v145
    %v202 = vpack.c.b16 %v150, %v146
    %v203 = vpack.c.b16 %v151, %v147
    %v204 = vpack.c.b16 %v152, %v148
    %v205 = vpack.c.b16 %v157, %v153
    %v206 = vpack.c.b16 %v158, %v154
    %v207 = vpack.c.b16 %v159, %v155
    %v208 = vpack.c.b16 %v160, %v156
    %v209 = vpack.c.b16 %v165, %v161
    %v210 = vpack.c.b16 %v166, %v162
    %v211 = vpack.c.b16 %v167, %v163
    %v212 = vpack.c.b16 %v168, %v164
    %v213 = vpack.c.b16 %v173, %v169
    %v214 = vpack.c.b16 %v174, %v170
    %v215 = vpack.c.b16 %v175, %v171
    %v216 = vpack.c.b16 %v176, %v172
    %v217 = vpack.c.b16 %v181, %v177
    %v218 = vpack.c.b16 %v182, %v178
    %v219 = vpack.c.b16 %v183, %v179
    %v220 = vpack.c.b16 %v184, %v180
    %v221 = vpack.c.b16 %v189, %v185
    %v222 = vpack.c.b16 %v190, %v186
    %v223 = vpack.c.b16 %v191, %v187
    %v224 = vpack.c.b16 %v192, %v188
    %257 = vmatprep.subr.bf16.mxu0 %v194
    %258 = vmatpush1.bf16.msra.mxu0 %v193
    %259 = vmatprep.subr.bf16.mxu0 %v198
    %260 = vmatpush1.bf16.msra.mxu0 %v197
    %261 = vmatprep.subr.bf16.mxu0 %v202
    %262 = vmatpush1.bf16.msra.mxu0 %v201
    %263 = vmatprep.subr.bf16.mxu0 %v206
    %264 = vmatpush1.bf16.msra.mxu0 %v205
    %265 = vmatprep.subr.bf16.mxu0 %v210
    %266 = vmatpush1.bf16.msra.mxu0 %v209
    %267 = vmatprep.subr.bf16.mxu0 %v214
    %268 = vmatpush1.bf16.msra.mxu0 %v213
    %269 = vmatprep.subr.bf16.mxu0 %v218
    %270 = vmatpush1.bf16.msra.mxu0 %v217
    %271 = vmatprep.subr.bf16.mxu0 %v222
    %272 = vmatpush1.bf16.msra.mxu0 %v221
    %273 = vmatprep.subr.bf16.mxu0 0
    %274 = vmatpush1.bf16.msra.mxu0 0
    %275 = vmatprep.subr.bf16.mxu0 0
    %276 = vmatpush1.bf16.msra.mxu0 0
    %277 = vmatprep.subr.bf16.mxu0 0
    %278 = vmatpush1.bf16.msra.mxu0 0
    %279 = vmatprep.subr.bf16.mxu0 0
    %280 = vmatpush1.bf16.msra.mxu0 0
    %281 = vmatprep.subr.bf16.mxu0 0
    %282 = vmatpush1.bf16.msra.mxu0 0
    %283 = vmatprep.subr.bf16.mxu0 0
    %284 = vmatpush1.bf16.msra.mxu0 0
    %285 = vmatprep.subr.bf16.mxu0 0
    %286 = vmatpush1.bf16.msra.mxu0 0
    %287 = vmatprep.subr.bf16.mxu0 0
    %288 = vmatpush1.bf16.msra.mxu0 0
    %289 = vmatprep.mubr.bf16.mxu0 0
    %290 = vmatmul.mubr.bf16.gmra.mrb[0].mxu0 %v58
    %v291 = vpop.f32.mrb[0].mxu0
    %v292 = vadd.f32 0.0, %v291
    %v293 = vpop.f32.mrb[0].mxu0
    %v294 = vadd.f32 0.0, %v293
    %v295 = vpop.f32.mrb[0].mxu0
    %v296 = vpop.f32.mrb[0].mxu0
    %297 = vdwg.mxu0
    %298 = vmatprep.subr.bf16.mxu0 %v196
    %299 = vmatpush1.bf16.msra.mxu0 %v195
    %300 = vmatprep.subr.bf16.mxu0 %v200
    %301 = vmatpush1.bf16.msra.mxu0 %v199
    %302 = vmatprep.subr.bf16.mxu0 %v204
    %303 = vmatpush1.bf16.msra.mxu0 %v203
    %304 = vmatprep.subr.bf16.mxu0 %v208
    %305 = vmatpush1.bf16.msra.mxu0 %v207
    %306 = vmatprep.subr.bf16.mxu0 %v212
    %307 = vmatpush1.bf16.msra.mxu0 %v211
    %308 = vmatprep.subr.bf16.mxu0 %v216
    %309 = vmatpush1.bf16.msra.mxu0 %v215
    %310 = vmatprep.subr.bf16.mxu0 %v220
    %311 = vmatpush1.bf16.msra.mxu0 %v219
    %312 = vmatprep.subr.bf16.mxu0 %v224
    %313 = vmatpush1.bf16.msra.mxu0 %v223
    %314 = vmatprep.subr.bf16.mxu0 0
    %315 = vmatpush1.bf16.msra.mxu0 0
    %316 = vmatprep.subr.bf16.mxu0 0
    %317 = vmatpush1.bf16.msra.mxu0 0
    %318 = vmatprep.subr.bf16.mxu0 0
    %319 = vmatpush1.bf16.msra.mxu0 0
    %320 = vmatprep.subr.bf16.mxu0 0
    %321 = vmatpush1.bf16.msra.mxu0 0
    %322 = vmatprep.subr.bf16.mxu0 0
    %323 = vmatpush1.bf16.msra.mxu0 0
    %324 = vmatprep.subr.bf16.mxu0 0
    %325 = vmatpush1.bf16.msra.mxu0 0
    %326 = vmatprep.subr.bf16.mxu0 0
    %327 = vmatpush1.bf16.msra.mxu0 0
    %328 = vmatprep.subr.bf16.mxu0 0
    %329 = vmatpush1.bf16.msra.mxu0 0
    %330 = vmatprep.mubr.bf16.mxu0 0
    %331 = vmatmul.mubr.bf16.gmra.mrb[0].mxu0 %v58
    %v332 = vpop.f32.mrb[0].mxu0
    %v333 = vadd.f32 0.0, %v332
    %v334 = vpop.f32.mrb[0].mxu0
    %v335 = vadd.f32 0.0, %v334
    %v336 = vpop.f32.mrb[0].mxu0
    %v337 = vpop.f32.mrb[0].mxu0
    %338 = vdwg.mxu0
    %v345 = vunpack.c.l.b16 %v59
    %v346 = vunpack.c.h.b16 %v59
    %v347 = vunpack.c.l.b16 %v60
    %v348 = vunpack.c.h.b16 %v60
    %v349 = vunpack.c.l.b16 %v61
    %v350 = vunpack.c.h.b16 %v61
    %v351 = vunpack.c.l.b16 %v62
    %v352 = vunpack.c.h.b16 %v62
    %v353 = vunpack.c.l.b16 %v63
    %v354 = vunpack.c.h.b16 %v63
    %v355 = vunpack.c.l.b16 %v64
    %v356 = vunpack.c.h.b16 %v64
    %v357 = vpack.c.b16 %v349, %v345
    %v358 = vpack.c.b16 %v350, %v346
    %v359 = vpack.c.b16 %v351, %v347
    %v360 = vpack.c.b16 %v352, %v348
    %v361 = vpack.c.b16 %v353, %v353
    %v362 = vpack.c.b16 %v354, %v354
    %v363 = vpack.c.b16 %v355, %v355
    %v364 = vpack.c.b16 %v356, %v356
    %vm369 = vcmask 195584
    %v371 = vsel %vm369, %v57, 0
    %vm373 = vcmask 1043456
    %v375 = vsel %vm373, %v361, 0
    %v378 = vsel %vm373, %v362, 0
    %v381 = vsel %vm373, %v363, 0
    %v384 = vsel %vm373, %v364, 0
    %386 = vmatprep.subr.bf16.mxu0 %v358
    %387 = vmatpush1.bf16.msra.mxu0 %v357
    %388 = vmatprep.subr.bf16.mxu0 %v378
    %389 = vmatpush1.bf16.msra.mxu0 %v375
    %390 = vmatprep.subr.bf16.mxu0 0
    %391 = vmatpush1.bf16.msra.mxu0 0
    %392 = vmatprep.subr.bf16.mxu0 0
    %393 = vmatpush1.bf16.msra.mxu0 0
    %394 = vmatprep.subr.bf16.mxu0 0
    %395 = vmatpush1.bf16.msra.mxu0 0
    %396 = vmatprep.subr.bf16.mxu0 0
    %397 = vmatpush1.bf16.msra.mxu0 0
    %398 = vmatprep.subr.bf16.mxu0 0
    %399 = vmatpush1.bf16.msra.mxu0 0
    %400 = vmatprep.subr.bf16.mxu0 0
    %401 = vmatpush1.bf16.msra.mxu0 0
    %402 = vmatprep.subr.bf16.mxu0 0
    %403 = vmatpush1.bf16.msra.mxu0 0
    %404 = vmatprep.subr.bf16.mxu0 0
    %405 = vmatpush1.bf16.msra.mxu0 0
    %406 = vmatprep.subr.bf16.mxu0 0
    %407 = vmatpush1.bf16.msra.mxu0 0
    %408 = vmatprep.subr.bf16.mxu0 0
    %409 = vmatpush1.bf16.msra.mxu0 0
    %410 = vmatprep.subr.bf16.mxu0 0
    %411 = vmatpush1.bf16.msra.mxu0 0
    %412 = vmatprep.subr.bf16.mxu0 0
    %413 = vmatpush1.bf16.msra.mxu0 0
    %414 = vmatprep.subr.bf16.mxu0 0
    %415 = vmatpush1.bf16.msra.mxu0 0
    %416 = vmatprep.subr.bf16.mxu0 0
    %417 = vmatpush1.bf16.msra.mxu0 0
    %418 = vmatprep.mubr.bf16.mxu0 0
    %419 = vmatmul.mubr.bf16.gmra.mrb[0].mxu0 %v371
    %v420 = vpop.f32.mrb[0].mxu0
    %v421 = vadd.f32 %v292, %v420
    %v422 = vpop.f32.mrb[0].mxu0
    %v423 = vadd.f32 %v294, %v422
    %v424 = vpop.f32.mrb[0].mxu0
    %v425 = vpop.f32.mrb[0].mxu0
    %426 = vdwg.mxu0
    %427 = vmatprep.subr.bf16.mxu0 %v360
    %428 = vmatpush1.bf16.msra.mxu0 %v359
    %429 = vmatprep.subr.bf16.mxu0 %v384
    %430 = vmatpush1.bf16.msra.mxu0 %v381
    %431 = vmatprep.subr.bf16.mxu0 0
    %432 = vmatpush1.bf16.msra.mxu0 0
    %433 = vmatprep.subr.bf16.mxu0 0
    %434 = vmatpush1.bf16.msra.mxu0 0
    %435 = vmatprep.subr.bf16.mxu0 0
    %436 = vmatpush1.bf16.msra.mxu0 0
    %437 = vmatprep.subr.bf16.mxu0 0
    %438 = vmatpush1.bf16.msra.mxu0 0
    %439 = vmatprep.subr.bf16.mxu0 0
    %440 = vmatpush1.bf16.msra.mxu0 0
    %441 = vmatprep.subr.bf16.mxu0 0
    %442 = vmatpush1.bf16.msra.mxu0 0
    %443 = vmatprep.subr.bf16.mxu0 0
    %444 = vmatpush1.bf16.msra.mxu0 0
    %445 = vmatprep.subr.bf16.mxu0 0
    %446 = vmatpush1.bf16.msra.mxu0 0
    %447 = vmatprep.subr.bf16.mxu0 0
    %448 = vmatpush1.bf16.msra.mxu0 0
    %449 = vmatprep.subr.bf16.mxu0 0
    %450 = vmatpush1.bf16.msra.mxu0 0
    %451 = vmatprep.subr.bf16.mxu0 0
    %452 = vmatpush1.bf16.msra.mxu0 0
    %453 = vmatprep.subr.bf16.mxu0 0
    %454 = vmatpush1.bf16.msra.mxu0 0
    %455 = vmatprep.subr.bf16.mxu0 0
    %456 = vmatpush1.bf16.msra.mxu0 0
    %457 = vmatprep.subr.bf16.mxu0 0
    %458 = vmatpush1.bf16.msra.mxu0 0
    %459 = vmatprep.mubr.bf16.mxu0 0
    %460 = vmatmul.mubr.bf16.gmra.mrb[0].mxu0 %v371
    %v461 = vpop.f32.mrb[0].mxu0
    %v462 = vadd.f32 %v333, %v461
    %v463 = vpop.f32.mrb[0].mxu0
    %v464 = vadd.f32 %v335, %v463
    %v465 = vpop.f32.mrb[0].mxu0
    %v466 = vpop.f32.mrb[0].mxu0
    %467 = vdwg.mxu0
    %v468 = vld [vmem:[%s4] sm:$0xf]
    %v470 = vlaneseq
    %v471 = vshrl.u32 %v470, 7
    %v472 = vsub.s32 0, %v471
    %v473 = vrot.slane %v468, %v472
    %v474 = vlaneseq
    %v475 = vshrl.u32 %v474, 7
    %v476 = vsub.s32 1, %v475
    %v477 = vrot.slane %v468, %v476
    %v478 = vlaneseq
    %v479 = vshrl.u32 %v478, 7
    %v480 = vsub.s32 2, %v479
    %v481 = vrot.slane %v468, %v480
    %v482 = vlaneseq
    %v483 = vshrl.u32 %v482, 7
    %v484 = vsub.s32 3, %v483
    %v485 = vrot.slane %v468, %v484
    %v490 = vadd.f32 %v421, %v473
    %v491 = vadd.f32 %v423, %v477
    %v492 = vadd.f32 %v462, %v481
    %v493 = vadd.f32 %v464, %v485
    %v494 = vmax.f32 %v490, 0.0
    %v495 = vmax.f32 %v491, 0.0
    %v496 = vmax.f32 %v492, 0.0
    %v497 = vmax.f32 %v493, 0.0
    %v498 = vpack.c.bf16 %v494, %v494
    %v499 = vpack.c.bf16 %v495, %v495
    %v500 = vpack.c.bf16 %v496, %v496
    %v501 = vpack.c.bf16 %v497, %v497
    %v502 = vld [vmem:[#allocation4] sm:$0xf]
    %v503 = vld [vmem:[#allocation4 + $0x4] sm:$0xf]
    %v504 = vld [vmem:[#allocation4 + $0x8] sm:$0xf]
    %v505 = vld [vmem:[#allocation4 + $0xc] sm:$0xf]
    %v506 = vld [vmem:[#allocation4 + $0x10] sm:$0xf]
    %v507 = vld [vmem:[#allocation4 + $0x14] sm:$0xf]
    %v508 = vld [vmem:[#allocation4 + $0x18] sm:$0xf]
    %v509 = vld [vmem:[#allocation4 + $0x1c] sm:$0xf]
    %v510 = vld [vmem:[#allocation4 + $0x20] sm:$0xf]
    %v511 = vld [vmem:[#allocation4 + $0x24] sm:$0xf]
    %v512 = vld [vmem:[#allocation4 + $0x28] sm:$0xf]
    %v513 = vld [vmem:[#allocation4 + $0x2c] sm:$0xf]
    %v514 = vld [vmem:[#allocation4 + $0x30] sm:$0xf]
    %v515 = vld [vmem:[#allocation4 + $0x34] sm:$0xf]
    %v516 = vld [vmem:[#allocation4 + $0x38] sm:$0xf]
    %v517 = vld [vmem:[#allocation4 + $0x3c] sm:$0xf]
    %v518 = vld [vmem:[#allocation4 + $0x40] sm:$0xf]
    %v519 = vld [vmem:[#allocation4 + $0x44] sm:$0xf]
    %v520 = vld [vmem:[#allocation4 + $0x48] sm:$0xf]
    %v521 = vld [vmem:[#allocation4 + $0x4c] sm:$0xf]
    %v522 = vld [vmem:[#allocation4 + $0x50] sm:$0xf]
    %v523 = vld [vmem:[#allocation4 + $0x54] sm:$0xf]
    %v524 = vld [vmem:[#allocation4 + $0x58] sm:$0xf]
    %v525 = vld [vmem:[#allocation4 + $0x5c] sm:$0xf]
    %v526 = vld [vmem:[#allocation4 + $0x60] sm:$0xf]
    %v527 = vld [vmem:[#allocation4 + $0x64] sm:$0xf]
    %v528 = vld [vmem:[#allocation4 + $0x68] sm:$0xf]
    %v529 = vld [vmem:[#allocation4 + $0x6c] sm:$0xf]
    %v530 = vld [vmem:[#allocation4 + $0x70] sm:$0xf]
    %v531 = vld [vmem:[#allocation4 + $0x74] sm:$0xf]
    %v532 = vld [vmem:[#allocation4 + $0x78] sm:$0xf]
    %v533 = vld [vmem:[#allocation4 + $0x7c] sm:$0xf]
    %v534 = vld [vmem:[#allocation4 + $0x80] sm:$0xf]
    %v535 = vld [vmem:[#allocation4 + $0x84] sm:$0xf]
    %v536 = vld [vmem:[#allocation4 + $0x88] sm:$0xf]
    %v537 = vld [vmem:[#allocation4 + $0x8c] sm:$0xf]
    %v538 = vld [vmem:[#allocation4 + $0x90] sm:$0xf]
    %v539 = vld [vmem:[#allocation4 + $0x94] sm:$0xf]
    %v540 = vld [vmem:[#allocation4 + $0x98] sm:$0xf]
    %v541 = vld [vmem:[#allocation4 + $0x9c] sm:$0xf]
    %v542 = vld [vmem:[#allocation4 + $0xa0] sm:$0xf]
    %v543 = vld [vmem:[#allocation4 + $0xa4] sm:$0xf]
    %v544 = vld [vmem:[#allocation4 + $0xa8] sm:$0xf]
    %v545 = vld [vmem:[#allocation4 + $0xac] sm:$0xf]
    %v546 = vld [vmem:[#allocation4 + $0xb0] sm:$0xf]
    %v547 = vld [vmem:[#allocation4 + $0xb4] sm:$0xf]
    %v548 = vld [vmem:[#allocation4 + $0xb8] sm:$0xf]
    %v549 = vld [vmem:[#allocation4 + $0xbc] sm:$0xf]
    %v550 = vld [vmem:[#allocation4 + $0xc0] sm:$0xf]
    %v551 = vld [vmem:[#allocation4 + $0xc4] sm:$0xf]
    %v552 = vld [vmem:[#allocation4 + $0xc8] sm:$0xf]
    %v553 = vld [vmem:[#allocation4 + $0xcc] sm:$0xf]
    %v554 = vld [vmem:[#allocation4 + $0xd0] sm:$0xf]
    %v555 = vld [vmem:[#allocation4 + $0xd4] sm:$0xf]
    %v556 = vld [vmem:[#allocation4 + $0xd8] sm:$0xf]
    %v557 = vld [vmem:[#allocation4 + $0xdc] sm:$0xf]
    %v558 = vld [vmem:[#allocation4 + $0xe0] sm:$0xf]
    %v559 = vld [vmem:[#allocation4 + $0xe4] sm:$0xf]
    %v560 = vld [vmem:[#allocation4 + $0xe8] sm:$0xf]
    %v561 = vld [vmem:[#allocation4 + $0xec] sm:$0xf]
    %v562 = vld [vmem:[#allocation4 + $0xf0] sm:$0xf]
    %v563 = vld [vmem:[#allocation4 + $0xf4] sm:$0xf]
    %v564 = vld [vmem:[#allocation4 + $0xf8] sm:$0xf]
    %v565 = vld [vmem:[#allocation4 + $0xfc] sm:$0xf]
    %v566 = vld [vmem:[%s6] sm:$0x1]
    %v568 = vlaneseq
    %v569 = vshrl.u32 %v568, 7
    %v570 = vsub.s32 0, %v569
    %v571 = vrot.slane %v566, %v570
    %v637 = vunpack.c.l.b16 %v502
    %v638 = vunpack.c.l.b16 %v503
    %v639 = vunpack.c.l.b16 %v504
    %v640 = vunpack.c.l.b16 %v505
    %v641 = vunpack.c.l.b16 %v506
    %v642 = vunpack.c.l.b16 %v507
    %v643 = vunpack.c.l.b16 %v508
    %v644 = vunpack.c.l.b16 %v509
    %v645 = vunpack.c.l.b16 %v510
    %v646 = vunpack.c.l.b16 %v511
    %v647 = vunpack.c.l.b16 %v512
    %v648 = vunpack.c.l.b16 %v513
    %v649 = vunpack.c.l.b16 %v514
    %v650 = vunpack.c.l.b16 %v515
    %v651 = vunpack.c.l.b16 %v516
    %v652 = vunpack.c.l.b16 %v517
    %v653 = vunpack.c.l.b16 %v518
    %v654 = vunpack.c.l.b16 %v519
    %v655 = vunpack.c.l.b16 %v520
    %v656 = vunpack.c.l.b16 %v521
    %v657 = vunpack.c.l.b16 %v522
    %v658 = vunpack.c.l.b16 %v523
    %v659 = vunpack.c.l.b16 %v524
    %v660 = vunpack.c.l.b16 %v525
    %v661 = vunpack.c.l.b16 %v526
    %v662 = vunpack.c.l.b16 %v527
    %v663 = vunpack.c.l.b16 %v528
    %v664 = vunpack.c.l.b16 %v529
    %v665 = vunpack.c.l.b16 %v530
    %v666 = vunpack.c.l.b16 %v531
    %v667 = vunpack.c.l.b16 %v532
    %v668 = vunpack.c.l.b16 %v533
    %v669 = vunpack.c.l.b16 %v534
    %v670 = vunpack.c.l.b16 %v535
    %v671 = vunpack.c.l.b16 %v536
    %v672 = vunpack.c.l.b16 %v537
    %v673 = vunpack.c.l.b16 %v538
    %v674 = vunpack.c.l.b16 %v539
    %v675 = vunpack.c.l.b16 %v540
    %v676 = vunpack.c.l.b16 %v541
    %v677 = vunpack.c.l.b16 %v542
    %v678 = vunpack.c.l.b16 %v543
    %v679 = vunpack.c.l.b16 %v544
    %v680 = vunpack.c.l.b16 %v545
    %v681 = vunpack.c.l.b16 %v546
    %v682 = vunpack.c.l.b16 %v547
    %v683 = vunpack.c.l.b16 %v548
    %v684 = vunpack.c.l.b16 %v549
    %v685 = vunpack.c.l.b16 %v550
    %v686 = vunpack.c.l.b16 %v551
    %v687 = vunpack.c.l.b16 %v552
    %v688 = vunpack.c.l.b16 %v553
    %v689 = vunpack.c.l.b16 %v554
    %v690 = vunpack.c.l.b16 %v555
    %v691 = vunpack.c.l.b16 %v556
    %v692 = vunpack.c.l.b16 %v557
    %v693 = vunpack.c.l.b16 %v558
    %v694 = vunpack.c.l.b16 %v559
    %v695 = vunpack.c.l.b16 %v560
    %v696 = vunpack.c.l.b16 %v561
    %v697 = vunpack.c.l.b16 %v562
    %v698 = vunpack.c.l.b16 %v563
    %v699 = vunpack.c.l.b16 %v564
    %v700 = vunpack.c.l.b16 %v565
    %v701 = vpack.c.b16 %v638, %v637
    %v702 = vpack.c.b16 %v640, %v639
    %v703 = vpack.c.b16 %v642, %v641
    %v704 = vpack.c.b16 %v644, %v643
    %v705 = vpack.c.b16 %v646, %v645
    %v706 = vpack.c.b16 %v648, %v647
    %v707 = vpack.c.b16 %v650, %v649
    %v708 = vpack.c.b16 %v652, %v651
    %v709 = vpack.c.b16 %v654, %v653
    %v710 = vpack.c.b16 %v656, %v655
    %v711 = vpack.c.b16 %v658, %v657
    %v712 = vpack.c.b16 %v660, %v659
    %v713 = vpack.c.b16 %v662, %v661
    %v714 = vpack.c.b16 %v664, %v663
    %v715 = vpack.c.b16 %v666, %v665
    %v716 = vpack.c.b16 %v668, %v667
    %v717 = vpack.c.b16 %v670, %v669
    %v718 = vpack.c.b16 %v672, %v671
    %v719 = vpack.c.b16 %v674, %v673
    %v720 = vpack.c.b16 %v676, %v675
    %v721 = vpack.c.b16 %v678, %v677
    %v722 = vpack.c.b16 %v680, %v679
    %v723 = vpack.c.b16 %v682, %v681
    %v724 = vpack.c.b16 %v684, %v683
    %v725 = vpack.c.b16 %v686, %v685
    %v726 = vpack.c.b16 %v688, %v687
    %v727 = vpack.c.b16 %v690, %v689
    %v728 = vpack.c.b16 %v692, %v691
    %v729 = vpack.c.b16 %v694, %v693
    %v730 = vpack.c.b16 %v696, %v695
    %v731 = vpack.c.b16 %v698, %v697
    %v732 = vpack.c.b16 %v700, %v699
    %765 = vmatprep.subr.bf16.mxu0 0
    %766 = vmatpush1.bf16.msra.mxu0 %v701
    %767 = vmatprep.subr.bf16.mxu0 0
    %768 = vmatpush1.bf16.msra.mxu0 %v702
    %769 = vmatprep.subr.bf16.mxu0 0
    %770 = vmatpush1.bf16.msra.mxu0 %v703
    %771 = vmatprep.subr.bf16.mxu0 0
    %772 = vmatpush1.bf16.msra.mxu0 %v704
    %773 = vmatprep.subr.bf16.mxu0 0
    %774 = vmatpush1.bf16.msra.mxu0 %v705
    %775 = vmatprep.subr.bf16.mxu0 0
    %776 = vmatpush1.bf16.msra.mxu0 %v706
    %777 = vmatprep.subr.bf16.mxu0 0
    %778 = vmatpush1.bf16.msra.mxu0 %v707
    %779 = vmatprep.subr.bf16.mxu0 0
    %780 = vmatpush1.bf16.msra.mxu0 %v708
    %781 = vmatprep.subr.bf16.mxu0 0
    %782 = vmatpush1.bf16.msra.mxu0 %v709
    %783 = vmatprep.subr.bf16.mxu0 0
    %784 = vmatpush1.bf16.msra.mxu0 %v710
    %785 = vmatprep.subr.bf16.mxu0 0
    %786 = vmatpush1.bf16.msra.mxu0 %v711
    %787 = vmatprep.subr.bf16.mxu0 0
    %788 = vmatpush1.bf16.msra.mxu0 %v712
    %789 = vmatprep.subr.bf16.mxu0 0
    %790 = vmatpush1.bf16.msra.mxu0 %v713
    %791 = vmatprep.subr.bf16.mxu0 0
    %792 = vmatpush1.bf16.msra.mxu0 %v714
    %793 = vmatprep.subr.bf16.mxu0 0
    %794 = vmatpush1.bf16.msra.mxu0 %v715
    %795 = vmatprep.subr.bf16.mxu0 0
    %796 = vmatpush1.bf16.msra.mxu0 %v716
    %797 = vmatprep.mubr.bf16.mxu0 %v499
    %798 = vmatmul.mubr.bf16.gmra.mrb[0].mxu0 %v498
    %v799 = vpop.f32.mrb[0].mxu0
    %v800 = vadd.f32 %v571, %v799
    %v801 = vpop.f32.mrb[0].mxu0
    %v802 = vpop.f32.mrb[0].mxu0
    %v803 = vpop.f32.mrb[0].mxu0
    %804 = vdwg.mxu0
    %805 = vmatprep.subr.bf16.mxu0 0
    %806 = vmatpush1.bf16.msra.mxu0 %v717
    %807 = vmatprep.subr.bf16.mxu0 0
    %808 = vmatpush1.bf16.msra.mxu0 %v718
    %809 = vmatprep.subr.bf16.mxu0 0
    %810 = vmatpush1.bf16.msra.mxu0 %v719
    %811 = vmatprep.subr.bf16.mxu0 0
    %812 = vmatpush1.bf16.msra.mxu0 %v720
    %813 = vmatprep.subr.bf16.mxu0 0
    %814 = vmatpush1.bf16.msra.mxu0 %v721
    %815 = vmatprep.subr.bf16.mxu0 0
    %816 = vmatpush1.bf16.msra.mxu0 %v722
    %817 = vmatprep.subr.bf16.mxu0 0
    %818 = vmatpush1.bf16.msra.mxu0 %v723
    %819 = vmatprep.subr.bf16.mxu0 0
    %820 = vmatpush1.bf16.msra.mxu0 %v724
    %821 = vmatprep.subr.bf16.mxu0 0
    %822 = vmatpush1.bf16.msra.mxu0 %v725
    %823 = vmatprep.subr.bf16.mxu0 0
    %824 = vmatpush1.bf16.msra.mxu0 %v726
    %825 = vmatprep.subr.bf16.mxu0 0
    %826 = vmatpush1.bf16.msra.mxu0 %v727
    %827 = vmatprep.subr.bf16.mxu0 0
    %828 = vmatpush1.bf16.msra.mxu0 %v728
    %829 = vmatprep.subr.bf16.mxu0 0
    %830 = vmatpush1.bf16.msra.mxu0 %v729
    %831 = vmatprep.subr.bf16.mxu0 0
    %832 = vmatpush1.bf16.msra.mxu0 %v730
    %833 = vmatprep.subr.bf16.mxu0 0
    %834 = vmatpush1.bf16.msra.mxu0 %v731
    %835 = vmatprep.subr.bf16.mxu0 0
    %836 = vmatpush1.bf16.msra.mxu0 %v732
    %837 = vmatprep.mubr.bf16.mxu0 %v501
    %838 = vmatmul.mubr.bf16.gmra.mrb[0].mxu0 %v500
    %v839 = vpop.f32.mrb[0].mxu0
    %v840 = vadd.f32 %v800, %v839
    %v841 = vpop.f32.mrb[0].mxu0
    %v842 = vpop.f32.mrb[0].mxu0
    %v843 = vpop.f32.mrb[0].mxu0
    %844 = vdwg.mxu0
    %v845 = vtanh.pop %v840
    %v846 = vmul.f32 %v845, 0.05
    %v847 = vadd.f32 %v846, %v55
    %v848 = vmax.f32 %v847, -1.0
    %v849 = vmin.f32 %v848, 1.0
    %850 = vst [vmem:[%s7] sm:$0xf] %v849
    // Predicated region
    $region38: #{perturbation_forward.1} parent=1 // pred_check
      _
    $region39: #{perturbation_forward.1} parent=1 // pred_check_branch
      %852 = sbr.rel (0) target = $region41
    $region40: #{perturbation_forward.1} parent=1 // pred_region
      _
    $region41: #{perturbation_forward.1} parent=1 // pred_fallthru
      _
    // Predicated region
    $region42: #{perturbation_forward.1} parent=1 // pred_check
      _
    $region43: #{perturbation_forward.1} parent=1 // pred_check_branch
      %854 = sbr.rel (0) target = $region45
    $region44: #{perturbation_forward.1} parent=1 // pred_region
      _
    $region45: #{perturbation_forward.1} parent=1 // pred_fallthru
      _
    %855 = vsyncpa [#allocation3], 1
    %856 = vsyncpa [#allocation5], 1

</llo_original>
